<compile_context>
chip_gen: v5e
topology: v5e:2x2
jax: 0.10.0
libtpu: 0.0.40
codegen_flags: <defaults>
</compile_context>

<pallas_src>
import functools

import jax
import jax.numpy as jnp
from jax import lax
from jax.experimental import pallas as pl
from jax.experimental.pallas import tpu as pltpu


def _round_up(x, m):
    return (x + m - 1) // m * m


def _self_attn_kernel(denom_row, x_ref, wqk_ref, wvg_ref, mask_ref, out_ref):
    tn = out_ref.shape[2]
    j0 = pl.multiple_of(pl.program_id(1) * tn, 128)

    x = x_ref[0]                                    # (Cp, N) f32; row Cp-1 == 1
    x_col = x_ref[0, :, pl.ds(j0, tn)]              # (Cp, TN) column tile

    # Key-side projection through pre-fused Wqk = wq.T @ wk (column tile only).
    t = jnp.dot(wqk_ref[...], x_col, preferred_element_type=jnp.float32)   # (Cp, TN)

    # s[i, j] = sum_c x[c, i] * t[c, j]  ==  ((wq x).T (wk x))[:, j_tile]
    s = lax.dot_general(x, t, (((0,), (0,)), ((), ())),
                        preferred_element_type=jnp.float32)                # (N, TN)

    # Unnormalized softmax over axis 0 (torch softmax dim=1); the 1/denom
    # scaling commutes with the i-contraction below, so it is deferred.
    p = jnp.exp(s - jnp.max(s, axis=0, keepdims=True))                     # (N, TN)

    # Value projection (gamma folded into the weight).  Row `denom_row` of the
    # weight selects x's constant ones-row, so the matmul below also emits the
    # softmax denominator on the MXU (no separate XLU reduction).
    h = jnp.dot(wvg_ref[...], x, preferred_element_type=jnp.float32)       # (Cvp, N)

    # bf16 operands, f32 accumulation (only matmul with real contraction depth).
    acc = jnp.dot(h.astype(jnp.bfloat16), p.astype(jnp.bfloat16),
                  preferred_element_type=jnp.float32)                      # (Cvp, TN)

    inv = pl.reciprocal(acc[denom_row:denom_row + 1, :], approx=True)      # (1, TN)
    out_ref[0] = (acc * inv + mask_ref[...]).astype(out_ref.dtype)


def self_attention_mask_forward(x, wq, wk, wv, gamma, mask,
                                out_channel, out_height, out_width, out_choices):
    B, C, H, W = x.shape
    N = H * W
    Cv = out_choices * out_channel

    if H != out_width or W != out_height:
        # TODO(synk): adaptive_avg_pool2d / F.interpolate resize path not
        # implemented (same swapped H/out_width comparison as the torch module).
        raise NotImplementedError("spatial resize path not implemented")

    # Padded sizes: channels get one extra ones-row (denominator feeder) and a
    # full sublane group; value-output rows get the denominator row and round
    # up to 16 so the output store stays unmasked.
    Cp = _round_up(C + 1, 8)
    Cvp = _round_up(Cv + 1, 8)
    denom_row = Cv

    TN = 128 if N % 128 == 0 else N
    grid = (B, N // TN)

    # x, zero-padded on channels, with a constant ones row at Cp-1.
    x_flat = x.reshape(B, C, N).astype(jnp.float32)
    x_p = jnp.zeros((B, Cp, N), jnp.float32)
    x_p = x_p.at[:, :C, :].set(x_flat)
    x_p = x_p.at[:, Cp - 1, :].set(1.0)

    # Fused query/key weight:  f.T @ g == x.T @ (wq.T @ wk) @ x
    wqk_p = jnp.zeros((Cp, Cp), jnp.float32)
    wqk_p = wqk_p.at[:C, :C].set(jnp.dot(wq.T, wk).astype(jnp.float32))

    # gamma folded into value weight; row `denom_row` picks x's ones row so the
    # value matmul also produces the softmax denominator.
    wvg_p = jnp.zeros((Cvp, Cp), jnp.float32)
    wvg_p = wvg_p.at[:Cv, :C].set((gamma * wv).astype(jnp.float32))
    wvg_p = wvg_p.at[denom_row, Cp - 1].set(1.0)

    # Static mask rearranged to the kernel's (Cv, N) layout, zero-padded rows:
    # kernel row = choice * out_channel + channel, column = h * W + w.
    mask_full = jnp.broadcast_to(
        mask, (1, out_channel, out_height, out_width, out_choices))
    mask_k = jnp.transpose(mask_full[0], (3, 0, 1, 2)).reshape(Cv, N)
    mask_p = jnp.zeros((Cvp, N), jnp.float32)
    mask_p = mask_p.at[:Cv, :].set(mask_k.astype(jnp.float32))

    kernel = functools.partial(_self_attn_kernel, denom_row)

    out_p = pl.pallas_call(
        kernel,
        out_shape=jax.ShapeDtypeStruct((B, Cvp, N), jnp.float32),
        grid_spec=pltpu.PrefetchScalarGridSpec(
            num_scalar_prefetch=0,
            grid=grid,
            in_specs=[
                pl.BlockSpec((1, Cp, N), lambda b, j: (b, 0, 0)),   # x (per batch, full)
                pl.BlockSpec((Cp, Cp), lambda b, j: (0, 0)),        # Wqk
                pl.BlockSpec((Cvp, Cp), lambda b, j: (0, 0)),       # gamma*Wv (+ones row)
                pl.BlockSpec((Cvp, TN), lambda b, j: (0, j)),       # mask tile (fused add)
            ],
            out_specs=pl.BlockSpec((1, Cvp, TN), lambda b, j: (b, 0, j)),
        ),
        compiler_params=pltpu.CompilerParams(
            dimension_semantics=("parallel", "parallel")),
    )(x_p, wqk_p, wvg_p, mask_p)

    out = out_p[:, :Cv, :].reshape(B, out_choices, out_channel, out_height, out_width)
    out = jnp.transpose(out, (0, 2, 3, 4, 1))        # (B, Co, Ho, Wo, choices)
    return out


def reference_forward(x, wq, wk, wv, gamma, mask,
                      out_channel, out_height, out_width, out_choices):
    """Pure-JAX reference mirroring the PyTorch forward."""
    B, C, H, W = x.shape
    N = H * W
    xf = x.reshape(B, C, N)
    f = jnp.einsum('oc,bcn->bon', wq, xf)
    g = jnp.einsum('oc,bcn->bon', wk, xf)
    h = jnp.einsum('oc,bcn->bon', wv, xf)
    s = jnp.einsum('bci,bcj->bij', f, g)          # (B, N, N)
    beta = jax.nn.softmax(s, axis=1)              # torch dim=1
    out = gamma * jnp.einsum('bvi,bij->bvj', h, beta)
    out = out.reshape(B, out_choices, out_channel, out_height, out_width)
    out = jnp.transpose(out, (0, 2, 3, 4, 1))
    return out + mask


if __name__ == "__main__":
    # Module config (learn_static=True, learn_dynamic=True, bias=False)
    B, C, H, W = 2, 4, 16, 16
    out_channel, out_height, out_width, out_choices = 4, 16, 16, 3
    Cv = out_choices * out_channel
    init_weights_cfg = [0.1, 0.2, 0.3]
    init_std = 0.02

    key = jax.random.PRNGKey(0)
    k1, k2, k3, k4, k5 = jax.random.split(key, 5)

    # Deterministic synthetic parameter init (shapes match the torch module).
    wq = 0.1 * jax.random.normal(k1, (C, C), jnp.float32)        # query.weight squeezed
    wk = 0.1 * jax.random.normal(k2, (C, C), jnp.float32)        # key.weight
    wv = 0.1 * jax.random.normal(k3, (Cv, C), jnp.float32)       # value.weight
    gamma = jnp.float32(0.5)   # nonzero so the dynamic-attention path is exercised
    mask_means = jnp.asarray(init_weights_cfg, jnp.float32) * out_choices
    mask = mask_means + init_std * jax.random.normal(
        k4, (1, out_channel, out_height, out_width, out_choices), jnp.float32)

    x = jax.random.normal(k5, (B, C, H, W), jnp.float32)

    out = self_attention_mask_forward(
        x, wq, wk, wv, gamma, mask, out_channel, out_height, out_width, out_choices)
    out = jax.block_until_ready(out)

    ref = reference_forward(
        x, wq, wk, wv, gamma, mask, out_channel, out_height, out_width, out_choices)

    assert out.shape == (B, out_channel, out_height, out_width, out_choices), out.shape
    # Tolerance covers the EUP approximate reciprocal, the Wqk reassociation,
    # and the bf16 MXU operands of the value/denominator matmul.
    assert jnp.allclose(out, ref, atol=2e-3, rtol=2e-3), float(jnp.max(jnp.abs(out - ref)))
    print("KERNEL_OK")
</pallas_src>

<mosaic_0001>
module attributes {stable_mosaic.version = 11 : i64} {
  func.func @_self_attn_kernel(%arg0: i32, %arg1: i32, %arg2: memref<1x8x256xf32, #tpu.memory_space<vmem>>, %arg3: memref<8x8xf32, #tpu.memory_space<vmem>>, %arg4: memref<16x8xf32, #tpu.memory_space<vmem>>, %arg5: memref<16x128xf32, #tpu.memory_space<vmem>>, %arg6: memref<1x16x128xf32, #tpu.memory_space<vmem>>) attributes {dimension_semantics = [#tpu.dimension_semantics<parallel>, #tpu.dimension_semantics<parallel>], iteration_bounds = array<i64: 2, 2>, scalar_prefetch = 0 : i64, scratch_operands = 0 : i64, tpu.core_type = #tpu.core_type<tc>, window_params = [{transform_indices = @transform_0, window_bounds = array<i64: 1, 8, 256>}, {pipeline_mode = #tpu.pipeline_mode<synchronous>, transform_indices = @transform_1, window_bounds = array<i64: 8, 8>}, {pipeline_mode = #tpu.pipeline_mode<synchronous>, transform_indices = @transform_2, window_bounds = array<i64: 16, 8>}, {transform_indices = @transform_3, window_bounds = array<i64: 16, 128>}, {transform_indices = @transform_4, window_bounds = array<i64: 1, 16, 128>}]} {
    %c128_i32 = arith.constant 128 : i32
    %0 = arith.muli %arg1, %c128_i32 : i32
    %1 = tpu.assume_multiple %0, 128 : i32
    %c0 = arith.constant 0 : index
    %c0_0 = arith.constant 0 : index
    %c0_1 = arith.constant 0 : index
    %2 = vector.load %arg2[%c0, %c0_0, %c0_1] : memref<1x8x256xf32, #tpu.memory_space<vmem>>, vector<1x8x256xf32>
    %3 = vector.shape_cast %2 : vector<1x8x256xf32> to vector<8x256xf32>
    %c0_2 = arith.constant 0 : index
    %c0_3 = arith.constant 0 : index
    %4 = arith.index_cast %1 : i32 to index
    %5 = vector.load %arg2[%c0_2, %c0_3, %4] : memref<1x8x256xf32, #tpu.memory_space<vmem>>, vector<1x8x128xf32>
    %6 = vector.shape_cast %5 : vector<1x8x128xf32> to vector<8x128xf32>
    %c0_4 = arith.constant 0 : index
    %c0_5 = arith.constant 0 : index
    %7 = vector.load %arg3[%c0_4, %c0_5] : memref<8x8xf32, #tpu.memory_space<vmem>>, vector<8x8xf32>
    %cst = arith.constant dense<0.000000e+00> : vector<8x128xf32>
    %8 = tpu.matmul %7, %6, %cst {dimension_numbers = #tpu.dot_dimension_numbers<[1], [0], [0], [1], [0, 0, 1, 1], [], []>} : vector<8x8xf32>, vector<8x128xf32>, vector<8x128xf32> -> vector<8x128xf32>
    %cst_6 = arith.constant dense<0.000000e+00> : vector<256x128xf32>
    %9 = tpu.matmul %3, %8, %cst_6 {dimension_numbers = #tpu.dot_dimension_numbers<[0], [0], [1], [1], [0, 1, 1, 1], [], []>} : vector<8x256xf32>, vector<8x128xf32>, vector<256x128xf32> -> vector<256x128xf32>
    %cst_7 = arith.constant dense<0xFF800000> : vector<128xf32>
    %10 = vector.multi_reduction <maximumf>, %9, %cst_7 [0] : vector<256x128xf32> to vector<128xf32>
    %11 = vector.shape_cast %10 : vector<128xf32> to vector<1x128xf32>
    %12 = vector.broadcast %11 : vector<1x128xf32> to vector<256x128xf32>
    %13 = arith.subf %9, %12 : vector<256x128xf32>
    %14 = math.exp %13 : vector<256x128xf32>
    %c0_8 = arith.constant 0 : index
    %c0_9 = arith.constant 0 : index
    %15 = vector.load %arg4[%c0_8, %c0_9] : memref<16x8xf32, #tpu.memory_space<vmem>>, vector<16x8xf32>
    %cst_10 = arith.constant dense<0.000000e+00> : vector<16x256xf32>
    %16 = tpu.matmul %15, %3, %cst_10 {dimension_numbers = #tpu.dot_dimension_numbers<[1], [0], [0], [1], [0, 0, 1, 1], [], []>} : vector<16x8xf32>, vector<8x256xf32>, vector<16x256xf32> -> vector<16x256xf32>
    %17 = arith.truncf %16 : vector<16x256xf32> to vector<16x256xbf16>
    %18 = arith.truncf %14 : vector<256x128xf32> to vector<256x128xbf16>
    %cst_11 = arith.constant dense<0.000000e+00> : vector<16x128xf32>
    %19 = tpu.matmul %17, %18, %cst_11 {dimension_numbers = #tpu.dot_dimension_numbers<[1], [0], [0], [1], [0, 0, 1, 1], [], []>} : vector<16x256xbf16>, vector<256x128xbf16>, vector<16x128xf32> -> vector<16x128xf32>
    %20 = vector.extract_strided_slice %19 {offsets = [12, 0], sizes = [1, 128], strides = [1, 1]} : vector<16x128xf32> to vector<1x128xf32>
    %21 = tpu.reciprocal %20 {approx = true} : vector<1x128xf32> -> vector<1x128xf32>
    %22 = vector.broadcast %21 : vector<1x128xf32> to vector<16x128xf32>
    %23 = arith.mulf %19, %22 : vector<16x128xf32>
    %c0_12 = arith.constant 0 : index
    %c0_13 = arith.constant 0 : index
    %24 = vector.load %arg5[%c0_12, %c0_13] : memref<16x128xf32, #tpu.memory_space<vmem>>, vector<16x128xf32>
    %25 = arith.addf %23, %24 : vector<16x128xf32>
    %c0_14 = arith.constant 0 : index
    %c0_15 = arith.constant 0 : index
    %c0_16 = arith.constant 0 : index
    %26 = vector.load %arg6[%c0_14, %c0_15, %c0_16] : memref<1x16x128xf32, #tpu.memory_space<vmem>>, vector<1x16x128xf32>
    %27 = vector.shape_cast %26 : vector<1x16x128xf32> to vector<16x128xf32>
    %28 = vector.shape_cast %25 : vector<16x128xf32> to vector<1x16x128xf32>
    tpu.vector_store %arg6[%c0_14, %c0_15, %c0_16], %28 {strides = array<i32>} : memref<1x16x128xf32, #tpu.memory_space<vmem>>, vector<1x16x128xf32>,
    return
  }
  func.func @transform_0(%arg0: i32, %arg1: i32) -> (i32, i32, i32) {
    %c0_i32 = arith.constant 0 : i32
    %c0_i32_0 = arith.constant 0 : i32
    %c0_i32_1 = arith.constant 0 : i32
    return %arg0, %c0_i32, %c0_i32_0 : i32, i32, i32
  }
  func.func @transform_1(%arg0: i32, %arg1: i32) -> (i32, i32) {
    %c0_i32 = arith.constant 0 : i32
    %c0_i32_0 = arith.constant 0 : i32
    %c0_i32_1 = arith.constant 0 : i32
    return %c0_i32, %c0_i32_0 : i32, i32
  }
  func.func @transform_2(%arg0: i32, %arg1: i32) -> (i32, i32) {
    %c0_i32 = arith.constant 0 : i32
    %c0_i32_0 = arith.constant 0 : i32
    %c0_i32_1 = arith.constant 0 : i32
    return %c0_i32, %c0_i32_0 : i32, i32
  }
  func.func @transform_3(%arg0: i32, %arg1: i32) -> (i32, i32) {
    %c0_i32 = arith.constant 0 : i32
    %c0_i32_0 = arith.constant 0 : i32
    return %c0_i32, %arg1 : i32, i32
  }
  func.func @transform_4(%arg0: i32, %arg1: i32) -> (i32, i32, i32) {
    %c0_i32 = arith.constant 0 : i32
    %c0_i32_0 = arith.constant 0 : i32
    return %arg0, %c0_i32, %arg1 : i32, i32, i32
  }
}

</mosaic_0001>

<llo_original>
// kernel: tpu_custom_call.1
$region0: #{tpu_custom_call.1}
  #allocation0 [shape = 'u32[]', space=smem, size = 0x4, offset = 0x4, fixed_abs, tag = 'smem constant byte address 0x4 - core index']
  #allocation1 [shape = 'u32[72,128]{1,0:T(1,128)}', space=vmem, size = 0x9000, scoped, tag = 'internal scratch']
  %s0 = inlined_call_operand.hbm [shape: f32[2,8,256], index: 0, kind: input, shape index: {}]
  %s1 = inlined_call_operand.vmem [shape: f32[8,8], index: 1, kind: input, shape index: {}]
  %s2 = inlined_call_operand.vmem [shape: f32[16,8], index: 2, kind: input, shape index: {}]
  %s3 = inlined_call_operand.hbm [shape: f32[16,256], index: 3, kind: input, shape index: {}]
  %s4 = inlined_call_operand.hbm [shape: f32[2,16,256], index: 4, kind: output, shape index: {}]
  %s5 = sld [smem:[#allocation0]]
  $region57: #{tpu_custom_call.1} parent=0
    _
  %s7 = ssub.s32 1, %s5
  %s8 = scalar_select 0, %s7, %s5
  $region1: #{tpu_custom_call.1} parent=0
    #allocation2 [shape = 'u8[16384]{0}', space=vmem, size = 0x4000, scoped, tag = 'input window, operand 0']
    #allocation3 [shape = 's32[2]{0}', space=sflag, size = 0x8, scoped, tag = 'scoped memory for tpu_custom_call.1']
    #allocation4 [shape = 's32[2]{0}', space=sflag, size = 0x8, scoped, tag = 'scoped memory for tpu_custom_call.1']
    #allocation5 [shape = 'u8[16384]{0}', space=vmem, size = 0x4000, scoped, tag = 'input window, operand 3']
    #allocation6 [shape = 's32[2]{0}', space=sflag, size = 0x8, scoped, tag = 'scoped memory for tpu_custom_call.1']
    #allocation7 [shape = 'u8[16384]{0}', space=vmem, size = 0x4000, scoped, tag = 'output window, operand 0']
    %9 = vsyncpa [#allocation3], 0
    %s10 = scalar_lea.sflag [#allocation3], 1
    %11 = vsyncpa %s10, 0
    %12 = vsyncpa [#allocation6], 0
    %s13 = scalar_lea.sflag [#allocation6], 1
    %14 = vsyncpa %s13, 0
    %15 = vsyncpa [#allocation4], 0
    %s16 = scalar_lea.sflag [#allocation4], 1
    %17 = vsyncpa %s16, 0
    loop: start=0, step=1, limit=6
    $region2: #{tpu_custom_call.1} parent=1 // loop_pre_header
      _
    $region3: #{tpu_custom_call.1} parent=1 // loop_header
      %s19 = sphi 0, %s23
      %p20 = scmp.ge.s32.totalorder %s19, 6
      %s26 = sphi 0, %s38
      %s27 = sphi 0, %s34
      %s28 = sphi 0, %s26
      %s29 = sphi 0, %s27
      %s30 = sphi 0, %s28
      %s31 = sphi 0, %s29
      %s41 = sphi 0, %s43
      %s44 = sphi 0, %s41
      %s45 = sphi 0, %s44
      %s61 = sphi 0, %s45
      %s65 = sphi 0, %s65
      %s67 = sphi 0, %s65
      %s68 = sphi 0, %s67
      %s82 = sphi 0, %s68
      %s86 = sphi 0, %s86
      %s88 = sphi 0, %s86
      %s89 = sphi 0, %s88
      %s103 = sphi 0, %s89
      %s109 = sphi 0, %s111
      %s112 = sphi 0, %s109
      %s113 = sphi 0, %s112
      %s129 = sphi 0, %s113
      %s137 = sphi 0, %s139
      %s140 = sphi 0, %s137
      %s141 = sphi 0, %s140
      %s157 = sphi 0, %s141
    $region4: #{tpu_custom_call.1} parent=1 // loop_header_branch
      %22 = sbr.rel (%p20) target = $region8
    $region5: #{tpu_custom_call.1} parent=1 // loop_body
      %s24 = ssub.s32 %s19, 1
      %s25 = ssub.s32 %s19, 2
      %s32 = sadd.s32 1, %s27
      %p33 = scmp.ge.s32.totalorder %s32, 2
      %s34 = scalar_select %p33, 0, %s32
      %s35 = sadd.s32 1, %s26
      %s36 = scalar_select %p33, %s35, %s26
      %p37 = scmp.ge.s32.totalorder %s36, 2
      %s38 = scalar_select %p37, 0, %s36
      %s39 = ssub.s32 %s26, %s38
      %p40 = scmp.eq.s32.totalorder %s39, 0
      %s42 = sadd.s32 %s41, 1
      %s43 = scalar_select %p40, %s41, %s42
      %p46 = pneg %p40
      %p47 = scmp.eq.s32.totalorder %s19, 3
      %p48 = por %p46, %p47
      %p49 = scmp.ne.s32.totalorder %s41, %s44
      %p50 = scmp.eq.s32.totalorder %s19, 0
      %p51 = por %p49, %p50
      %p52 = scmp.ne.s32.totalorder %s41, %s44
      %p53 = scmp.eq.s32.totalorder %s24, 3
      %p54 = por %p52, %p53
      %p55 = scmp.ne.s32.totalorder %s44, %s45
      %p56 = scmp.eq.s32.totalorder %s24, 0
      %p57 = por %p55, %p56
      %p58 = scmp.ne.s32.totalorder %s44, %s45
      %p59 = scmp.eq.s32.totalorder %s25, 3
      %p60 = por %p58, %p59
      %p62 = scmp.ne.s32.totalorder %s45, %s61
      %p63 = scmp.eq.s32.totalorder %s25, 0
      %p64 = por %p62, %p63
      %s66 = sadd.s32 %s65, 1
      %p69 = scmp.eq.s32.totalorder %s19, 3
      %p70 = scmp.ne.s32.totalorder %s65, %s67
      %p71 = scmp.eq.s32.totalorder %s19, 0
      %p72 = por %p70, %p71
      %p73 = scmp.ne.s32.totalorder %s65, %s67
      %p74 = scmp.eq.s32.totalorder %s24, 3
      %p75 = por %p73, %p74
      %p76 = scmp.ne.s32.totalorder %s67, %s68
      %p77 = scmp.eq.s32.totalorder %s24, 0
      %p78 = por %p76, %p77
      %p79 = scmp.ne.s32.totalorder %s67, %s68
      %p80 = scmp.eq.s32.totalorder %s25, 3
      %p81 = por %p79, %p80
      %p83 = scmp.ne.s32.totalorder %s68, %s82
      %p84 = scmp.eq.s32.totalorder %s25, 0
      %p85 = por %p83, %p84
      %s87 = sadd.s32 %s86, 1
      %p90 = scmp.eq.s32.totalorder %s19, 3
      %p91 = scmp.ne.s32.totalorder %s86, %s88
      %p92 = scmp.eq.s32.totalorder %s19, 0
      %p93 = por %p91, %p92
      %p94 = scmp.ne.s32.totalorder %s86, %s88
      %p95 = scmp.eq.s32.totalorder %s24, 3
      %p96 = por %p94, %p95
      %p97 = scmp.ne.s32.totalorder %s88, %s89
      %p98 = scmp.eq.s32.totalorder %s24, 0
      %p99 = por %p97, %p98
      %p100 = scmp.ne.s32.totalorder %s88, %s89
      %p101 = scmp.eq.s32.totalorder %s25, 3
      %p102 = por %p100, %p101
      %p104 = scmp.ne.s32.totalorder %s89, %s103
      %p105 = scmp.eq.s32.totalorder %s25, 0
      %p106 = por %p104, %p105
      %s107 = ssub.s32 %s27, %s34
      %p108 = scmp.eq.s32.totalorder %s107, 0
      %s110 = sadd.s32 %s109, 1
      %s111 = scalar_select %p108, %s109, %s110
      %p114 = pneg %p108
      %p115 = scmp.eq.s32.totalorder %s19, 3
      %p116 = por %p114, %p115
      %p117 = scmp.ne.s32.totalorder %s109, %s112
      %p118 = scmp.eq.s32.totalorder %s19, 0
      %p119 = por %p117, %p118
      %p120 = scmp.ne.s32.totalorder %s109, %s112
      %p121 = scmp.eq.s32.totalorder %s24, 3
      %p122 = por %p120, %p121
      %p123 = scmp.ne.s32.totalorder %s112, %s113
      %p124 = scmp.eq.s32.totalorder %s24, 0
      %p125 = por %p123, %p124
      %p126 = scmp.ne.s32.totalorder %s112, %s113
      %p127 = scmp.eq.s32.totalorder %s25, 3
      %p128 = por %p126, %p127
      %p130 = scmp.ne.s32.totalorder %s113, %s129
      %p131 = scmp.eq.s32.totalorder %s25, 0
      %p132 = por %p130, %p131
      %s133 = ssub.s32 %s26, %s38
      %s134 = ssub.s32 %s27, %s34
      %s135 = sor.u32 %s133, %s134
      %p136 = scmp.eq.s32.totalorder %s135, 0
      %s138 = sadd.s32 %s137, 1
      %s139 = scalar_select %p136, %s137, %s138
      %p142 = pneg %p136
      %p143 = scmp.eq.s32.totalorder %s19, 3
      %p144 = por %p142, %p143
      %p145 = scmp.ne.s32.totalorder %s137, %s140
      %p146 = scmp.eq.s32.totalorder %s19, 0
      %p147 = por %p145, %p146
      %p148 = scmp.ne.s32.totalorder %s137, %s140
      %p149 = scmp.eq.s32.totalorder %s24, 3
      %p150 = por %p148, %p149
      %p151 = scmp.ne.s32.totalorder %s140, %s141
      %p152 = scmp.eq.s32.totalorder %s24, 0
      %p153 = por %p151, %p152
      %p154 = scmp.ne.s32.totalorder %s140, %s141
      %p155 = scmp.eq.s32.totalorder %s25, 3
      %p156 = por %p154, %p155
      %p158 = scmp.ne.s32.totalorder %s141, %s157
      %p159 = scmp.eq.s32.totalorder %s25, 0
      %p160 = por %p158, %p159
      %p161 = scmp.le.s32.totalorder 1, %s19
      %p162 = scmp.lt.s32.totalorder %s19, 5
      %p163 = pnand %p161, %p162
      %p164 = pneg %p163
      // Predicated region
      $region9: #{tpu_custom_call.1} parent=5 // pred_check
        _
      $region10: #{tpu_custom_call.1} parent=5 // pred_check_branch
        %166 = sbr.rel (%p163) target = $region12
      $region11: #{tpu_custom_call.1} parent=5 // pred_region
        %s167 = ssub.s32 %s19, 1
        // Predicated region
        $region13: #{tpu_custom_call.1} parent=11 // pred_check
          %p168 = pneg %p78
        $region14: #{tpu_custom_call.1} parent=11 // pred_check_branch
          %170 = sbr.rel (%p168) target = $region16
        $region15: #{tpu_custom_call.1} parent=11 // pred_region
          _
        $region16: #{tpu_custom_call.1} parent=11 // pred_fallthru
          _
        // Predicated region
        $region17: #{tpu_custom_call.1} parent=11 // pred_check
          %p171 = pneg %p99
        $region18: #{tpu_custom_call.1} parent=11 // pred_check_branch
          %173 = sbr.rel (%p171) target = $region20
        $region19: #{tpu_custom_call.1} parent=11 // pred_region
          _
        $region20: #{tpu_custom_call.1} parent=11 // pred_fallthru
          _
      $region12: #{tpu_custom_call.1} parent=5 // pred_fallthru
        _
      %p174 = scmp.lt.s32.totalorder %s19, 4
      // Predicated region
      $region21: #{tpu_custom_call.1} parent=5 // pred_check
        %p175 = pneg %p174
      $region22: #{tpu_custom_call.1} parent=5 // pred_check_branch
        %177 = sbr.rel (%p175) target = $region24
      $region23: #{tpu_custom_call.1} parent=5 // pred_region
        // Predicated region
        $region25: #{tpu_custom_call.1} parent=23 // pred_check
          %p178 = pneg %p51
        $region26: #{tpu_custom_call.1} parent=23 // pred_check_branch
          %180 = sbr.rel (%p178) target = $region28
        $region27: #{tpu_custom_call.1} parent=23 // pred_region
          %s181 = sand.u32 %s41, 1
          %s182 = scalar_lea.sflag [#allocation3], %s181
          %s183 = sand.u32 %s41, 1
          %s184 = smul.addr %s183, 16
          %s185 = scalar_lea.vmem [#allocation2], %s184
          %187 = vsyncadd %s182, 0
          %s188 = smul.addr %s26, 2
          %s189 = smul.addr %s188, 8
          %s190 = scalar_lea.hbm %s0, %s189
          %s192 = sshll.u32 %s190, 4
          %s193 = int_to_ptr.hbm [resolvable:$true] %s192
          %s194 = sshll.u32 %s185, 4
          %s195 = int_to_ptr.vmem [resolvable:$true] %s194
          %197 = dma.hbm_to_vmem [thread:$0]  %s193, 256, %s195, %s182
        $region28: #{tpu_custom_call.1} parent=23 // pred_fallthru
          _
        // Predicated region
        $region29: #{tpu_custom_call.1} parent=23 // pred_check
          %p198 = pneg %p119
        $region30: #{tpu_custom_call.1} parent=23 // pred_check_branch
          %200 = sbr.rel (%p198) target = $region32
        $region31: #{tpu_custom_call.1} parent=23 // pred_region
          %s201 = sand.u32 %s109, 1
          %s202 = scalar_lea.sflag [#allocation6], %s201
          %s203 = sand.u32 %s109, 1
          %s204 = smul.addr %s203, 16
          %s205 = scalar_lea.vmem [#allocation5], %s204
          %207 = vsyncadd %s202, 0
          %s208 = smul.addr %s27, 8
          %s209 = scalar_lea.hbm %s3, %s208
          %s210 = sshll.u32 %s209, 4
          %s211 = int_to_ptr.hbm [resolvable:$true] %s210
          %s212 = sshll.u32 %s205, 4
          %s213 = int_to_ptr.vmem [resolvable:$true] %s212
          %218 = dma.hbm_to_vmem [thread:$0]  %s211, 256, %s213, %s202, 256, 128, 8
        $region32: #{tpu_custom_call.1} parent=23 // pred_fallthru
          _
      $region24: #{tpu_custom_call.1} parent=5 // pred_fallthru
        _
      %p219 = scmp.le.s32.totalorder 1, %s19
      %p220 = scmp.lt.s32.totalorder %s19, 5
      %p221 = pnand %p219, %p220
      %p222 = pneg %p221
      // Predicated region
      $region33: #{tpu_custom_call.1} parent=5 // pred_check
        _
      $region34: #{tpu_custom_call.1} parent=5 // pred_check_branch
        %224 = sbr.rel (%p221) target = $region36
      $region35: #{tpu_custom_call.1} parent=5 // pred_region
        %s225 = ssub.s32 %s19, 1
        %s226 = sand.u32 %s44, 1
        %s227 = scalar_lea.sflag [#allocation3], %s226
        %s228 = sand.u32 %s44, 1
        %s229 = smul.addr %s228, 16
        %s230 = scalar_lea.vmem [#allocation2], %s229
        // Predicated region
        $region37: #{tpu_custom_call.1} parent=35 // pred_check
          %p231 = pneg %p57
        $region38: #{tpu_custom_call.1} parent=35 // pred_check_branch
          %233 = sbr.rel (%p231) target = $region40
        $region39: #{tpu_custom_call.1} parent=35 // pred_region
          %235 = dma.done %s227, 256
        $region40: #{tpu_custom_call.1} parent=35 // pred_fallthru
          _
        %s236 = sand.u32 %s112, 1
        %s237 = scalar_lea.sflag [#allocation6], %s236
        %s238 = sand.u32 %s112, 1
        %s239 = smul.addr %s238, 16
        %s240 = scalar_lea.vmem [#allocation5], %s239
        // Predicated region
        $region41: #{tpu_custom_call.1} parent=35 // pred_check
          %p241 = pneg %p125
        $region42: #{tpu_custom_call.1} parent=35 // pred_check_branch
          %243 = sbr.rel (%p241) target = $region44
        $region43: #{tpu_custom_call.1} parent=35 // pred_region
          %245 = dma.done %s237, 256
        $region44: #{tpu_custom_call.1} parent=35 // pred_fallthru
          _
        %s246 = sand.u32 %s44, 1
        %s247 = scalar_lea.sflag [#allocation3], %s246
        %s248 = sand.u32 %s44, 1
        %s249 = smul.addr %s248, 16
        %s250 = scalar_lea.vmem [#allocation2], %s249
        %p251 = pneg %p57
        %p252 = pneg %p54
        %p253 = pneg %p78
        %p254 = pneg %p75
        %p255 = pneg %p99
        %p256 = pneg %p96
        %s257 = sand.u32 %s112, 1
        %s258 = scalar_lea.sflag [#allocation6], %s257
        %s259 = sand.u32 %s112, 1
        %s260 = smul.addr %s259, 16
        %s261 = scalar_lea.vmem [#allocation5], %s260
        %p262 = pneg %p125
        %p263 = pneg %p122
        %p264 = pneg %p153
        %p265 = pneg %p150
        %s266 = sand.u32 %s140, 1
        %s267 = scalar_lea.sflag [#allocation4], %s266
        %s268 = sand.u32 %s140, 1
        %s269 = smul.addr %s268, 16
        %s270 = scalar_lea.vmem [#allocation7], %s269
        %s271 = smul.u32 %s29, 128
        %v272 = vld [vmem:[%s230] sm:$0xff]
        %v273 = vld [vmem:[%s230 + $0x8] sm:$0xff]
        %s274 = sshra.s32 %s271, 7
        %s275 = sand.u32 %s271, 127
        %s276 = smul.addr %s274, 8
        %s277 = scalar_lea.vmem %s230, %s276 [#allocation2]
        %v278 = vld [vmem:[%s277] sm:$0xff]
        %v279 = vld [vmem:[%s1] sm:$0xff]
        %vm280 = vcmask 64512
        %v282 = vsel %vm280, %v279, 0
        %284 = vmatpush.msra.mxu0 0.0
        %285 = vmatpush.msra.mxu0 0.0
        %286 = vmatpush.msra.mxu0 0.0
        %287 = vmatpush.msra.mxu0 0.0
        %288 = vmatpush.msra.mxu0 0.0
        %289 = vmatpush.msra.mxu0 0.0
        %290 = vmatpush.msra.mxu0 0.0
        %291 = vmatpush.msra.mxu0 0.0
        %292 = vmatpush.msra.mxu0 0.0
        %293 = vmatpush.msra.mxu0 0.0
        %294 = vmatpush.msra.mxu0 0.0
        %295 = vmatpush.msra.mxu0 0.0
        %296 = vmatpush.msra.mxu0 0.0
        %297 = vmatpush.msra.mxu0 0.0
        %298 = vmatpush.msra.mxu0 0.0
        %299 = vmatpush.msra.mxu0 %v278
        %300 = vmatmul.f32.gmra.mxu0 %v282
        %v301 = vpop.f32.mrf.mxu0
        %v302 = vadd.f32 0.0, %v301
        %303 = vdwg.mxu0
        %304 = vxpose.xlu0.b32.start [1/16] %v272, 128
        %305 = vxpose.xlu0.b32.cont [2/16] 0.0, 128
        %306 = vxpose.xlu0.b32.cont [3/16] 0.0, 128
        %307 = vxpose.xlu0.b32.cont [4/16] 0.0, 128
        %308 = vxpose.xlu0.b32.cont [5/16] 0.0, 128
        %309 = vxpose.xlu0.b32.cont [6/16] 0.0, 128
        %310 = vxpose.xlu0.b32.cont [7/16] 0.0, 128
        %311 = vxpose.xlu0.b32.cont [8/16] 0.0, 128
        %312 = vxpose.xlu0.b32.cont [9/16] 0.0, 128
        %313 = vxpose.xlu0.b32.cont [10/16] 0.0, 128
        %314 = vxpose.xlu0.b32.cont [11/16] 0.0, 128
        %315 = vxpose.xlu0.b32.cont [12/16] 0.0, 128
        %316 = vxpose.xlu0.b32.cont [13/16] 0.0, 128
        %317 = vxpose.xlu0.b32.cont [14/16] 0.0, 128
        %318 = vxpose.xlu0.b32.cont [15/16] 0.0, 128
        %319 = vxpose.xlu0.b32.end [16/16] 0.0, 128
        %v320 = vpop.trf.xlu0
        %v321 = vpop.trf.xlu0
        %v322 = vpop.trf.xlu0
        %v323 = vpop.trf.xlu0
        %v324 = vpop.trf.xlu0
        %v325 = vpop.trf.xlu0
        %v326 = vpop.trf.xlu0
        %v327 = vpop.trf.xlu0
        %v328 = vpop.trf.xlu0
        %v329 = vpop.trf.xlu0
        %v330 = vpop.trf.xlu0
        %v331 = vpop.trf.xlu0
        %v332 = vpop.trf.xlu0
        %v333 = vpop.trf.xlu0
        %v334 = vpop.trf.xlu0
        %v335 = vpop.trf.xlu0
        %336 = vxpose.xlu0.b32.start [1/16] %v273, 128
        %337 = vxpose.xlu0.b32.cont [2/16] 0.0, 128
        %338 = vxpose.xlu0.b32.cont [3/16] 0.0, 128
        %339 = vxpose.xlu0.b32.cont [4/16] 0.0, 128
        %340 = vxpose.xlu0.b32.cont [5/16] 0.0, 128
        %341 = vxpose.xlu0.b32.cont [6/16] 0.0, 128
        %342 = vxpose.xlu0.b32.cont [7/16] 0.0, 128
        %343 = vxpose.xlu0.b32.cont [8/16] 0.0, 128
        %344 = vxpose.xlu0.b32.cont [9/16] 0.0, 128
        %345 = vxpose.xlu0.b32.cont [10/16] 0.0, 128
        %346 = vxpose.xlu0.b32.cont [11/16] 0.0, 128
        %347 = vxpose.xlu0.b32.cont [12/16] 0.0, 128
        %348 = vxpose.xlu0.b32.cont [13/16] 0.0, 128
        %349 = vxpose.xlu0.b32.cont [14/16] 0.0, 128
        %350 = vxpose.xlu0.b32.cont [15/16] 0.0, 128
        %351 = vxpose.xlu0.b32.end [16/16] 0.0, 128
        %v352 = vpop.trf.xlu0
        %v353 = vpop.trf.xlu0
        %v354 = vpop.trf.xlu0
        %v355 = vpop.trf.xlu0
        %v356 = vpop.trf.xlu0
        %v357 = vpop.trf.xlu0
        %v358 = vpop.trf.xlu0
        %v359 = vpop.trf.xlu0
        %v360 = vpop.trf.xlu0
        %v361 = vpop.trf.xlu0
        %v362 = vpop.trf.xlu0
        %v363 = vpop.trf.xlu0
        %v364 = vpop.trf.xlu0
        %v365 = vpop.trf.xlu0
        %v366 = vpop.trf.xlu0
        %v367 = vpop.trf.xlu0
        %v369 = vsel %vm280, %v320, 0
        %v372 = vsel %vm280, %v321, 0
        %v375 = vsel %vm280, %v322, 0
        %v378 = vsel %vm280, %v323, 0
        %v381 = vsel %vm280, %v324, 0
        %v384 = vsel %vm280, %v325, 0
        %v387 = vsel %vm280, %v326, 0
        %v390 = vsel %vm280, %v327, 0
        %v393 = vsel %vm280, %v328, 0
        %v396 = vsel %vm280, %v329, 0
        %v399 = vsel %vm280, %v330, 0
        %v402 = vsel %vm280, %v331, 0
        %v405 = vsel %vm280, %v332, 0
        %v408 = vsel %vm280, %v333, 0
        %v411 = vsel %vm280, %v334, 0
        %v414 = vsel %vm280, %v335, 0
        %v417 = vsel %vm280, %v352, 0
        %v420 = vsel %vm280, %v353, 0
        %v423 = vsel %vm280, %v354, 0
        %v426 = vsel %vm280, %v355, 0
        %v429 = vsel %vm280, %v356, 0
        %v432 = vsel %vm280, %v357, 0
        %v435 = vsel %vm280, %v358, 0
        %v438 = vsel %vm280, %v359, 0
        %v441 = vsel %vm280, %v360, 0
        %v444 = vsel %vm280, %v361, 0
        %v447 = vsel %vm280, %v362, 0
        %v450 = vsel %vm280, %v363, 0
        %v453 = vsel %vm280, %v364, 0
        %v456 = vsel %vm280, %v365, 0
        %v459 = vsel %vm280, %v366, 0
        %v462 = vsel %vm280, %v367, 0
        %464 = vmatpush.msra.mxu0 0.0
        %465 = vmatpush.msra.mxu0 0.0
        %466 = vmatpush.msra.mxu0 0.0
        %467 = vmatpush.msra.mxu0 0.0
        %468 = vmatpush.msra.mxu0 0.0
        %469 = vmatpush.msra.mxu0 0.0
        %470 = vmatpush.msra.mxu0 0.0
        %471 = vmatpush.msra.mxu0 0.0
        %472 = vmatpush.msra.mxu0 0.0
        %473 = vmatpush.msra.mxu0 0.0
        %474 = vmatpush.msra.mxu0 0.0
        %475 = vmatpush.msra.mxu0 0.0
        %476 = vmatpush.msra.mxu0 0.0
        %477 = vmatpush.msra.mxu0 0.0
        %478 = vmatpush.msra.mxu0 0.0
        %479 = vmatpush.msra.mxu0 %v302
        %480 = vmatmul.f32.gmra.mxu0 %v369
        %v481 = vpop.f32.mrf.mxu0
        %v482 = vadd.f32 0.0, %v481
        %483 = vmatmul.f32.gmra.mxu0 %v372
        %v484 = vpop.f32.mrf.mxu0
        %v485 = vadd.f32 0.0, %v484
        %486 = vmatmul.f32.gmra.mxu0 %v375
        %v487 = vpop.f32.mrf.mxu0
        %v488 = vadd.f32 0.0, %v487
        %489 = vmatmul.f32.gmra.mxu0 %v378
        %v490 = vpop.f32.mrf.mxu0
        %v491 = vadd.f32 0.0, %v490
        %492 = vmatmul.f32.gmra.mxu0 %v381
        %v493 = vpop.f32.mrf.mxu0
        %v494 = vadd.f32 0.0, %v493
        %495 = vmatmul.f32.gmra.mxu0 %v384
        %v496 = vpop.f32.mrf.mxu0
        %v497 = vadd.f32 0.0, %v496
        %498 = vmatmul.f32.gmra.mxu0 %v387
        %v499 = vpop.f32.mrf.mxu0
        %v500 = vadd.f32 0.0, %v499
        %501 = vmatmul.f32.gmra.mxu0 %v390
        %v502 = vpop.f32.mrf.mxu0
        %v503 = vadd.f32 0.0, %v502
        %504 = vmatmul.f32.gmra.mxu0 %v393
        %v505 = vpop.f32.mrf.mxu0
        %v506 = vadd.f32 0.0, %v505
        %507 = vmatmul.f32.gmra.mxu0 %v396
        %v508 = vpop.f32.mrf.mxu0
        %v509 = vadd.f32 0.0, %v508
        %510 = vmatmul.f32.gmra.mxu0 %v399
        %v511 = vpop.f32.mrf.mxu0
        %v512 = vadd.f32 0.0, %v511
        %513 = vmatmul.f32.gmra.mxu0 %v402
        %v514 = vpop.f32.mrf.mxu0
        %v515 = vadd.f32 0.0, %v514
        %516 = vmatmul.f32.gmra.mxu0 %v405
        %v517 = vpop.f32.mrf.mxu0
        %v518 = vadd.f32 0.0, %v517
        %519 = vmatmul.f32.gmra.mxu0 %v408
        %v520 = vpop.f32.mrf.mxu0
        %v521 = vadd.f32 0.0, %v520
        %522 = vmatmul.f32.gmra.mxu0 %v411
        %v523 = vpop.f32.mrf.mxu0
        %v524 = vadd.f32 0.0, %v523
        %525 = vmatmul.f32.gmra.mxu0 %v414
        %v526 = vpop.f32.mrf.mxu0
        %v527 = vadd.f32 0.0, %v526
        %528 = vmatmul.f32.gmra.mxu0 %v417
        %v529 = vpop.f32.mrf.mxu0
        %v530 = vadd.f32 0.0, %v529
        %531 = vmatmul.f32.gmra.mxu0 %v420
        %v532 = vpop.f32.mrf.mxu0
        %v533 = vadd.f32 0.0, %v532
        %534 = vmatmul.f32.gmra.mxu0 %v423
        %v535 = vpop.f32.mrf.mxu0
        %v536 = vadd.f32 0.0, %v535
        %537 = vmatmul.f32.gmra.mxu0 %v426
        %v538 = vpop.f32.mrf.mxu0
        %v539 = vadd.f32 0.0, %v538
        %540 = vmatmul.f32.gmra.mxu0 %v429
        %v541 = vpop.f32.mrf.mxu0
        %v542 = vadd.f32 0.0, %v541
        %543 = vmatmul.f32.gmra.mxu0 %v432
        %v544 = vpop.f32.mrf.mxu0
        %v545 = vadd.f32 0.0, %v544
        %546 = vmatmul.f32.gmra.mxu0 %v435
        %v547 = vpop.f32.mrf.mxu0
        %v548 = vadd.f32 0.0, %v547
        %549 = vmatmul.f32.gmra.mxu0 %v438
        %v550 = vpop.f32.mrf.mxu0
        %v551 = vadd.f32 0.0, %v550
        %552 = vmatmul.f32.gmra.mxu0 %v441
        %v553 = vpop.f32.mrf.mxu0
        %v554 = vadd.f32 0.0, %v553
        %555 = vmatmul.f32.gmra.mxu0 %v444
        %v556 = vpop.f32.mrf.mxu0
        %v557 = vadd.f32 0.0, %v556
        %558 = vmatmul.f32.gmra.mxu0 %v447
        %v559 = vpop.f32.mrf.mxu0
        %v560 = vadd.f32 0.0, %v559
        %561 = vmatmul.f32.gmra.mxu0 %v450
        %v562 = vpop.f32.mrf.mxu0
        %v563 = vadd.f32 0.0, %v562
        %564 = vmatmul.f32.gmra.mxu0 %v453
        %v565 = vpop.f32.mrf.mxu0
        %v566 = vadd.f32 0.0, %v565
        %567 = vmatmul.f32.gmra.mxu0 %v456
        %v568 = vpop.f32.mrf.mxu0
        %v569 = vadd.f32 0.0, %v568
        %570 = vmatmul.f32.gmra.mxu0 %v459
        %v571 = vpop.f32.mrf.mxu0
        %v572 = vadd.f32 0.0, %v571
        %573 = vmatmul.f32.gmra.mxu0 %v462
        %v574 = vpop.f32.mrf.mxu0
        %v575 = vadd.f32 0.0, %v574
        %576 = vdwg.mxu0
        %v577 = vmax.f32 %v482, %v494
        %v578 = vmax.f32 %v485, %v497
        %v579 = vmax.f32 %v488, %v500
        %v580 = vmax.f32 %v491, %v503
        %v581 = vmax.f32 %v577, %v506
        %v582 = vmax.f32 %v578, %v509
        %v583 = vmax.f32 %v579, %v512
        %v584 = vmax.f32 %v580, %v515
        %v585 = vmax.f32 %v581, %v518
        %v586 = vmax.f32 %v582, %v521
        %v587 = vmax.f32 %v583, %v524
        %v588 = vmax.f32 %v584, %v527
        %v589 = vmax.f32 %v585, %v530
        %v590 = vmax.f32 %v586, %v533
        %v591 = vmax.f32 %v587, %v536
        %v592 = vmax.f32 %v588, %v539
        %v593 = vmax.f32 %v589, %v542
        %v594 = vmax.f32 %v590, %v545
        %v595 = vmax.f32 %v591, %v548
        %v596 = vmax.f32 %v592, %v551
        %v597 = vmax.f32 %v593, %v554
        %v598 = vmax.f32 %v594, %v557
        %v599 = vmax.f32 %v595, %v560
        %v600 = vmax.f32 %v596, %v563
        %v601 = vmax.f32 %v597, %v566
        %v602 = vmax.f32 %v598, %v569
        %v603 = vmax.f32 %v599, %v572
        %v604 = vmax.f32 %v600, %v575
        %v605 = vmax.f32 %v601, %v602
        %v606 = vmax.f32 %v603, %v604
        %v607 = vmax.f32 %v605, %v606
        %v608 = vrot.slane %v607, 4
        %v609 = vmax.f32 %v607, %v608
        %v610 = vrot.slane %v609, 2
        %v611 = vmax.f32 %v609, %v610
        %v612 = vrot.slane %v611, 1
        %v613 = vmax.f32 %v611, %v612
        %v614 = vsub.f32 %v482, %v613
        %v615 = vsub.f32 %v485, %v613
        %v616 = vsub.f32 %v488, %v613
        %v617 = vsub.f32 %v491, %v613
        %v618 = vsub.f32 %v494, %v613
        %v619 = vsub.f32 %v497, %v613
        %v620 = vsub.f32 %v500, %v613
        %v621 = vsub.f32 %v503, %v613
        %v622 = vsub.f32 %v506, %v613
        %v623 = vsub.f32 %v509, %v613
        %v624 = vsub.f32 %v512, %v613
        %v625 = vsub.f32 %v515, %v613
        %v626 = vsub.f32 %v518, %v613
        %v627 = vsub.f32 %v521, %v613
        %v628 = vsub.f32 %v524, %v613
        %v629 = vsub.f32 %v527, %v613
        %v630 = vsub.f32 %v530, %v613
        %v631 = vsub.f32 %v533, %v613
        %v632 = vsub.f32 %v536, %v613
        %v633 = vsub.f32 %v539, %v613
        %v634 = vsub.f32 %v542, %v613
        %v635 = vsub.f32 %v545, %v613
        %v636 = vsub.f32 %v548, %v613
        %v637 = vsub.f32 %v551, %v613
        %v638 = vsub.f32 %v554, %v613
        %v639 = vsub.f32 %v557, %v613
        %v640 = vsub.f32 %v560, %v613
        %v641 = vsub.f32 %v563, %v613
        %v642 = vsub.f32 %v566, %v613
        %v643 = vsub.f32 %v569, %v613
        %v644 = vsub.f32 %v572, %v613
        %v645 = vsub.f32 %v575, %v613
        %v646 = vmul.f32 %v614, 1.442695
        %v647 = vpow.pop %v646
        %v648 = vmul.f32 %v615, 1.442695
        %v649 = vpow.pop %v648
        %v650 = vmul.f32 %v616, 1.442695
        %v651 = vpow.pop %v650
        %v652 = vmul.f32 %v617, 1.442695
        %v653 = vpow.pop %v652
        %v654 = vmul.f32 %v618, 1.442695
        %v655 = vpow.pop %v654
        %v656 = vmul.f32 %v619, 1.442695
        %v657 = vpow.pop %v656
        %v658 = vmul.f32 %v620, 1.442695
        %v659 = vpow.pop %v658
        %v660 = vmul.f32 %v621, 1.442695
        %v661 = vpow.pop %v660
        %v662 = vmul.f32 %v622, 1.442695
        %v663 = vpow.pop %v662
        %v664 = vmul.f32 %v623, 1.442695
        %v665 = vpow.pop %v664
        %v666 = vmul.f32 %v624, 1.442695
        %v667 = vpow.pop %v666
        %v668 = vmul.f32 %v625, 1.442695
        %v669 = vpow.pop %v668
        %v670 = vmul.f32 %v626, 1.442695
        %v671 = vpow.pop %v670
        %v672 = vmul.f32 %v627, 1.442695
        %v673 = vpow.pop %v672
        %v674 = vmul.f32 %v628, 1.442695
        %v675 = vpow.pop %v674
        %v676 = vmul.f32 %v629, 1.442695
        %v677 = vpow.pop %v676
        %v678 = vmul.f32 %v630, 1.442695
        %v679 = vpow.pop %v678
        %v680 = vmul.f32 %v631, 1.442695
        %v681 = vpow.pop %v680
        %v682 = vmul.f32 %v632, 1.442695
        %v683 = vpow.pop %v682
        %v684 = vmul.f32 %v633, 1.442695
        %v685 = vpow.pop %v684
        %v686 = vmul.f32 %v634, 1.442695
        %v687 = vpow.pop %v686
        %v688 = vmul.f32 %v635, 1.442695
        %v689 = vpow.pop %v688
        %v690 = vmul.f32 %v636, 1.442695
        %v691 = vpow.pop %v690
        %v692 = vmul.f32 %v637, 1.442695
        %v693 = vpow.pop %v692
        %v694 = vmul.f32 %v638, 1.442695
        %v695 = vpow.pop %v694
        %v696 = vmul.f32 %v639, 1.442695
        %v697 = vpow.pop %v696
        %v698 = vmul.f32 %v640, 1.442695
        %v699 = vpow.pop %v698
        %v700 = vmul.f32 %v641, 1.442695
        %v701 = vpow.pop %v700
        %v702 = vmul.f32 %v642, 1.442695
        %v703 = vpow.pop %v702
        %v704 = vmul.f32 %v643, 1.442695
        %v705 = vpow.pop %v704
        %v706 = vmul.f32 %v644, 1.442695
        %v707 = vpow.pop %v706
        %v708 = vmul.f32 %v645, 1.442695
        %v709 = vpow.pop %v708
        %v710 = vld [vmem:[%s2] sm:$0xff]
        %v711 = vld [vmem:[%s2 + $0x8] sm:$0xff]
        %v713 = vsel %vm280, %v710, 0
        %v716 = vsel %vm280, %v711, 0
        %718 = vmatpush.msra.mxu0 0.0
        %719 = vmatpush.msra.mxu0 0.0
        %720 = vmatpush.msra.mxu0 0.0
        %721 = vmatpush.msra.mxu0 0.0
        %722 = vmatpush.msra.mxu0 0.0
        %723 = vmatpush.msra.mxu0 0.0
        %724 = vmatpush.msra.mxu0 0.0
        %725 = vmatpush.msra.mxu0 0.0
        %726 = vmatpush.msra.mxu0 0.0
        %727 = vmatpush.msra.mxu0 0.0
        %728 = vmatpush.msra.mxu0 0.0
        %729 = vmatpush.msra.mxu0 0.0
        %730 = vmatpush.msra.mxu0 0.0
        %731 = vmatpush.msra.mxu0 0.0
        %732 = vmatpush.msra.mxu0 0.0
        %733 = vmatpush.msra.mxu0 %v272
        %734 = vmatmul.f32.gmra.mxu0 %v713
        %v735 = vpop.f32.mrf.mxu0
        %v736 = vadd.f32 0.0, %v735
        %737 = vmatmul.f32.gmra.mxu0 %v716
        %v738 = vpop.f32.mrf.mxu0
        %v739 = vadd.f32 0.0, %v738
        %740 = vdwg.mxu0
        %741 = vmatpush.msra.mxu0 0.0
        %742 = vmatpush.msra.mxu0 0.0
        %743 = vmatpush.msra.mxu0 0.0
        %744 = vmatpush.msra.mxu0 0.0
        %745 = vmatpush.msra.mxu0 0.0
        %746 = vmatpush.msra.mxu0 0.0
        %747 = vmatpush.msra.mxu0 0.0
        %748 = vmatpush.msra.mxu0 0.0
        %749 = vmatpush.msra.mxu0 0.0
        %750 = vmatpush.msra.mxu0 0.0
        %751 = vmatpush.msra.mxu0 0.0
        %752 = vmatpush.msra.mxu0 0.0
        %753 = vmatpush.msra.mxu0 0.0
        %754 = vmatpush.msra.mxu0 0.0
        %755 = vmatpush.msra.mxu0 0.0
        %756 = vmatpush.msra.mxu0 %v273
        %757 = vmatmul.f32.gmra.mxu0 %v713
        %v758 = vpop.f32.mrf.mxu0
        %v759 = vadd.f32 0.0, %v758
        %760 = vmatmul.f32.gmra.mxu0 %v716
        %v761 = vpop.f32.mrf.mxu0
        %v762 = vadd.f32 0.0, %v761
        %763 = vdwg.mxu0
        %v764 = vpack.c.bf16 %v739, %v736
        %v765 = vpack.c.bf16 %v762, %v759
        %v766 = vpack.c.bf16 %v649, %v647
        %v767 = vpack.c.bf16 %v653, %v651
        %v768 = vpack.c.bf16 %v657, %v655
        %v769 = vpack.c.bf16 %v661, %v659
        %v770 = vpack.c.bf16 %v665, %v663
        %v771 = vpack.c.bf16 %v669, %v667
        %v772 = vpack.c.bf16 %v673, %v671
        %v773 = vpack.c.bf16 %v677, %v675
        %v774 = vpack.c.bf16 %v681, %v679
        %v775 = vpack.c.bf16 %v685, %v683
        %v776 = vpack.c.bf16 %v689, %v687
        %v777 = vpack.c.bf16 %v693, %v691
        %v778 = vpack.c.bf16 %v697, %v695
        %v779 = vpack.c.bf16 %v701, %v699
        %v780 = vpack.c.bf16 %v705, %v703
        %v781 = vpack.c.bf16 %v709, %v707
        %782 = vmatpush.bf16.msra.mxu0 %v773
        %783 = vmatpush.bf16.msra.mxu0 %v772
        %784 = vmatpush.bf16.msra.mxu0 %v771
        %785 = vmatpush.bf16.msra.mxu0 %v770
        %786 = vmatpush.bf16.msra.mxu0 %v769
        %787 = vmatpush.bf16.msra.mxu0 %v768
        %788 = vmatpush.bf16.msra.mxu0 %v767
        %789 = vmatpush.bf16.msra.mxu0 %v766
        %790 = vmatmul.bf16.gmra.mxu0 %v764
        %v791 = vpop.f32.mrf.mxu0
        %v792 = vadd.f32 0.0, %v791
        %v793 = vpop.f32.mrf.mxu0
        %v794 = vadd.f32 0.0, %v793
        %795 = vdwg.mxu0
        %796 = vmatpush.bf16.msra.mxu0 %v781
        %797 = vmatpush.bf16.msra.mxu0 %v780
        %798 = vmatpush.bf16.msra.mxu0 %v779
        %799 = vmatpush.bf16.msra.mxu0 %v778
        %800 = vmatpush.bf16.msra.mxu0 %v777
        %801 = vmatpush.bf16.msra.mxu0 %v776
        %802 = vmatpush.bf16.msra.mxu0 %v775
        %803 = vmatpush.bf16.msra.mxu0 %v774
        %804 = vmatmul.bf16.gmra.mxu0 %v765
        %v805 = vpop.f32.mrf.mxu0
        %v806 = vadd.f32 %v792, %v805
        %v807 = vpop.f32.mrf.mxu0
        %v808 = vadd.f32 %v794, %v807
        %809 = vdwg.mxu0
        %v810 = vrcp.pop %v808
        %v811 = vperm.slane %v810, 4
        %v812 = vmul.f32 %v806, %v811
        %v813 = vmul.f32 %v808, %v811
        %v814 = vld [vmem:[%s240] sm:$0xff]
        %v815 = vld [vmem:[%s240 + $0x8] sm:$0xff]
        %v816 = vadd.f32 %v812, %v814
        %v817 = vadd.f32 %v813, %v815
        %818 = vst [vmem:[%s270] sm:$0xff] %v816
        %819 = vst [vmem:[%s270 + $0x8] sm:$0xff] %v817
        %s820 = sand.u32 %s140, 1
        %s821 = scalar_lea.sflag [#allocation4], %s820
        %s822 = sand.u32 %s140, 1
        %s823 = smul.addr %s822, 16
        %s824 = scalar_lea.vmem [#allocation7], %s823
        // Predicated region
        $region45: #{tpu_custom_call.1} parent=35 // pred_check
          %p825 = pneg %p150
        $region46: #{tpu_custom_call.1} parent=35 // pred_check_branch
          %827 = sbr.rel (%p825) target = $region48
        $region47: #{tpu_custom_call.1} parent=35 // pred_region
          %829 = vsyncadd %s821, 0
          %s830 = smul.addr %s28, 4
          %s831 = sadd.s32 %s29, %s830
          %s832 = smul.addr %s831, 8
          %s833 = scalar_lea.hbm %s4, %s832
          %s834 = sshll.u32 %s824, 4
          %s835 = int_to_ptr.vmem [resolvable:$true] %s834
          %s836 = sshll.u32 %s833, 4
          %s837 = int_to_ptr.hbm [resolvable:$true] %s836
          %842 = dma.vmem_to_hbm [thread:$0]  %s835, 256, %s837, %s821, 128, 256, 8
        $region48: #{tpu_custom_call.1} parent=35 // pred_fallthru
          _
      $region36: #{tpu_custom_call.1} parent=5 // pred_fallthru
        _
      %p843 = scmp.le.s32.totalorder 2, %s19
      // Predicated region
      $region49: #{tpu_custom_call.1} parent=5 // pred_check
        %p844 = pneg %p843
      $region50: #{tpu_custom_call.1} parent=5 // pred_check_branch
        %846 = sbr.rel (%p844) target = $region52
      $region51: #{tpu_custom_call.1} parent=5 // pred_region
        %s847 = ssub.s32 %s19, 2
        // Predicated region
        $region53: #{tpu_custom_call.1} parent=51 // pred_check
          %p848 = pneg %p156
        $region54: #{tpu_custom_call.1} parent=51 // pred_check_branch
          %850 = sbr.rel (%p848) target = $region56
        $region55: #{tpu_custom_call.1} parent=51 // pred_region
          %s851 = sand.u32 %s141, 1
          %s852 = scalar_lea.sflag [#allocation4], %s851
          %s853 = sand.u32 %s141, 1
          %s854 = smul.addr %s853, 16
          %s855 = scalar_lea.vmem [#allocation7], %s854
          %857 = dma.done %s852, 256
        $region56: #{tpu_custom_call.1} parent=51 // pred_fallthru
          _
      $region52: #{tpu_custom_call.1} parent=5 // pred_fallthru
        _
    $region6: #{tpu_custom_call.1} parent=1 // loop_footer
      %s23 = sadd.s32 1, %s19
    $region7: #{tpu_custom_call.1} parent=1 // loop_footer_branch
      %18 = sbr.rel target = $region3
    $region8: #{tpu_custom_call.1} parent=1 // loop_exit
      _
    %858 = vsyncpa [#allocation3], 1
    %s859 = scalar_lea.sflag [#allocation3], 1
    %860 = vsyncpa %s859, 1
    %861 = vsyncpa [#allocation6], 1
    %s862 = scalar_lea.sflag [#allocation6], 1
    %863 = vsyncpa %s862, 1
    %864 = vsyncpa [#allocation4], 1
    %s865 = scalar_lea.sflag [#allocation4], 1
    %866 = vsyncpa %s865, 1

</llo_original>
